<compile_context>
chip_gen: v7x
topology: tpu7x:2x2x1
jax: 0.10.0
libtpu: 0.0.40
codegen_flags: <defaults>
</compile_context>

<pallas_src>
import math

import jax
import jax.numpy as jnp
from jax import lax
from jax.experimental import pallas as pl
from jax.experimental.pallas import tpu as pltpu

EPS = 1e-15
MAX_PER_EDGE = -math.log(EPS)   # reference -log(sigmoid(s)+eps) saturates here (~34.54)


def _round_up(x, m):
    return (x + m - 1) // m * m


def _tree_sum(chunks):
    """Log-depth pairwise sum of a list of same-shaped arrays (exposes VALU ILP)."""
    chunks = list(chunks)
    while len(chunks) > 1:
        nxt = [chunks[k] + chunks[k + 1] for k in range(0, len(chunks) - 1, 2)]
        if len(chunks) % 2:
            nxt.append(chunks[-1])
        chunks = nxt
    return chunks[0]


def feasibility_loss_kernel(counts_ref, astar_i_ref, astar_j_ref, adj_ref,
                            mask_i_ref, mask_j_ref, out_ref):
    i = pl.program_id(0)
    j = pl.program_id(1)
    gj = pl.num_programs(1)

    # Output slab for row tile i is resident across the whole j (reduction) axis:
    # zero it on the first j step, accumulate directly into it.
    @pl.when(j == 0)
    def _():
        out_ref[...] = jnp.zeros_like(out_ref)

    # Skip tiles that contain no positive cross-group edge (scalar-prefetched counts).
    @pl.when(counts_ref[i * gj + j] > 0)
    def _():
        # Pairwise logits 'md,nd->mn' on the MXU (contract axis 1 of both, no transpose).
        s = lax.dot_general(astar_i_ref[...], astar_j_ref[...],
                            dimension_numbers=(((1,), (1,)), ((), ())),
                            preferred_element_type=jnp.float32)          # (tm, tn) f32
        tm, tn = s.shape

        mi = mask_i_ref[...]                       # (tm, 1) int32 {0,1}
        mj = mask_j_ref[...]                       # (1, tn) int32 {0,1} (lane-dense)

        # Strip-wise elementwise + fold: only `s` plus one (SR, tn) strip of temporaries
        # is live, so tile size is not capped by full tile^2 f32 temps.
        SR = min(tm, 128)
        part = None                                # (8, tn) f32 running partial
        for r0 in range(0, tm, SR):
            s_strip = s[r0:r0 + SR, :]
            # cross-group indicator: exactly one of the two masks is set.
            cross = (mi[r0:r0 + SR, :] + mj) == 1                        # (SR, tn) bool
            sel = jnp.logical_and(cross, adj_ref[r0:r0 + SR, :] != 0)    # (SR, tn) bool
            # -log(sigmoid(s)) == softplus(-s); clamp to match -log(sigmoid(s)+eps).
            val = jnp.minimum(jax.nn.softplus(-s_strip), MAX_PER_EDGE)
            masked = jnp.where(sel, val, 0.0)                            # (SR, tn) f32
            strip8 = _tree_sum([masked[r:r + 8, :] for r in range(0, SR, 8)])  # (8, tn)
            part = strip8 if part is None else part + strip8

        acc = _tree_sum([part[:, c:c + 128] for c in range(0, tn, 128)])  # (8, 128)
        out_ref[0] = out_ref[0] + acc


def feasibility_loss(A_star, edge_index, node_mask, *, num_nodes,
                     tile=512, compute_dtype=jnp.float32):
    """Feasibility (positive-edge) loss.

    A_star:     [N, D] node embeddings.
    edge_index: [2, E] int edge list.
    node_mask:  [N] bool/int group mask.
    tile:       row/col tile size (rounded to a multiple of 128; capped so the row-tile
                grid has >= 2 steps when padded N >= 256, so both v7x TensorCores get work).
    compute_dtype: jnp.float32 (exact; use on v5e) or jnp.bfloat16 (halves A_star DMA /
                VMEM and doubles MXU rate on v6e/v7x; accumulation stays f32).
    """
    N = int(num_nodes)
    D = int(A_star.shape[1])

    # --- tiling -------------------------------------------------------------------
    npad128 = _round_up(N, 128)
    tile = _round_up(max(128, min(int(tile), npad128)), 128)
    if npad128 >= 256:
        tile = min(tile, _round_up(npad128 // 2, 128))   # gi >= 2 -> v7x megacore sharding
    Npad = _round_up(N, tile)
    gi = Npad // tile
    gj = Npad // tile

    # --- plain-JAX glue -----------------------------------------------------------
    src, dst = edge_index[0], edge_index[1]

    # Dense {0,1} int8 adjacency (duplicates counted once == dense_to_sparse semantics).
    A = jnp.zeros((Npad, Npad), jnp.int8).at[src, dst].set(1)

    nm = node_mask.reshape(-1).astype(bool)
    m_i32 = nm.astype(jnp.int32)
    if Npad != N:
        m_i32 = jnp.pad(m_i32, (0, Npad - N))     # padded nodes have no edges -> no effect
    mask_col = m_i32.reshape(Npad, 1)             # query-side column
    mask_row = m_i32.reshape(1, Npad)             # key-side row (lane-dense, no transpose)

    Ast = A_star.astype(compute_dtype)
    if Npad != N:
        Ast = jnp.pad(Ast, ((0, Npad - N), (0, 0)))

    # Scalar-prefetched per-tile positive-edge counts, built O(E) from the edge list.
    # Duplicate edges over-count here, but only the "> 0" test matters in the kernel.
    cross_e = jnp.logical_xor(nm[src], nm[dst]).astype(jnp.int32)
    ti = (src // tile).astype(jnp.int32)
    tj = (dst // tile).astype(jnp.int32)
    counts = jnp.zeros((gi * gj,), jnp.int32).at[ti * gj + tj].add(cross_e)

    itemsize = jnp.dtype(compute_dtype).itemsize
    vmem_est = (2 * 2 * tile * D * itemsize       # double-buffered A_star tiles (q + k)
                + 2 * tile * tile                 # double-buffered int8 adjacency
                + 4 * 4 * tile                    # masks
                + 2 * 8 * 128 * 4                 # output slab
                + tile * tile * 4                 # logits s
                + 6 * 128 * tile * 4)             # strip temporaries headroom
    vmem_limit = int(min(max(2 * vmem_est, 32 << 20), 48 << 20))  # explicit, v7x-safe

    # TODO(synk): step 2 of tile skipping -- move the adjacency input to memory_space=pl.ANY
    # and issue its make_async_copy manually only when counts > 0 (double-buffered VMEM +
    # DMA sem), so empty tiles also skip the N^2 int8 DMA stream (biggest relative win on v5e).

    out = pl.pallas_call(
        feasibility_loss_kernel,
        out_shape=jax.ShapeDtypeStruct((gi, 8, 128), jnp.float32),
        grid_spec=pltpu.PrefetchScalarGridSpec(
            num_scalar_prefetch=1,
            grid=(gi, gj),                                         # reduction axis j last
            in_specs=[
                pl.BlockSpec((tile, D), lambda i, j, c: (i, 0)),   # A_star rows (query tile)
                pl.BlockSpec((tile, D), lambda i, j, c: (j, 0)),   # A_star rows (key tile)
                pl.BlockSpec((tile, tile), lambda i, j, c: (i, j)),  # int8 adjacency tile
                pl.BlockSpec((tile, 1), lambda i, j, c: (i, 0)),   # mask column (query)
                pl.BlockSpec((1, tile), lambda i, j, c: (0, j)),   # mask row (key, lane-dense)
            ],
            out_specs=pl.BlockSpec((1, 8, 128), lambda i, j, c: (i, 0, 0)),
        ),
        compiler_params=pltpu.CompilerParams(
            dimension_semantics=("parallel", "arbitrary"),         # i shards across TCs on v7x
            vmem_limit_bytes=vmem_limit),
        cost_estimate=pl.CostEstimate(
            flops=2 * Npad * Npad * D,
            transcendentals=Npad * Npad,
            bytes_accessed=(Npad * Npad                            # int8 adjacency
                            + 2 * Npad * D * itemsize              # two A_star streams
                            + 8 * Npad + 4 * gi * gj               # masks + counts
                            + gi * 8 * 128 * 4)),                  # partial-sum output
    )(counts, Ast, Ast, A, mask_col, mask_row)

    # tiny final reduction of the per-row-tile (8,128) partials
    return jnp.sum(out)


if __name__ == "__main__":
    key = jax.random.PRNGKey(0)
    N, D, E = 128, 32, 256  # args.num_nodes = 128, embedding dim = 32, 256 random edges

    k1, k2, k3, k4 = jax.random.split(key, 4)
    A_star = jax.random.normal(k1, (N, D), jnp.float32)
    src = jax.random.randint(k2, (E,), 0, N)
    dst = jax.random.randint(k3, (E,), 0, N)
    edge_index = jnp.stack([src, dst])                 # [2, E]
    node_mask = jax.random.bernoulli(k4, 0.5, (N,))    # bool [N]

    loss = feasibility_loss(A_star, edge_index, node_mask, num_nodes=N)
    loss = jax.block_until_ready(loss)

    # pure-JAX reference, faithful to the PyTorch formula (with eps)
    A = jnp.zeros((N, N), jnp.float32).at[edge_index[0], edge_index[1]].add(1.0)
    m = node_mask.astype(jnp.float32)
    A_mask = 1.0 - (jnp.outer(m, m) + jnp.outer(1.0 - m, 1.0 - m))
    sel = ((A * A_mask) != 0.0).astype(jnp.float32)
    S = A_star @ A_star.T
    ref = jnp.sum(sel * (-jnp.log(jax.nn.sigmoid(S) + EPS)))
    assert jnp.allclose(loss, ref, rtol=1e-3, atol=1e-3), (float(loss), float(ref))

    print("KERNEL_OK")
</pallas_src>

<mosaic_0001>
module attributes {stable_mosaic.version = 11 : i64} {
  func.func @feasibility_loss_kernel(%arg0: i32, %arg1: i32, %arg2: memref<1xi32, #tpu.memory_space<smem>>, %arg3: memref<128x32xf32, #tpu.memory_space<vmem>>, %arg4: memref<128x32xf32, #tpu.memory_space<vmem>>, %arg5: memref<128x128xi8, #tpu.memory_space<vmem>>, %arg6: memref<128x1xi32, #tpu.memory_space<vmem>>, %arg7: memref<1x128xi32, #tpu.memory_space<vmem>>, %arg8: memref<1x8x128xf32, #tpu.memory_space<vmem>>) attributes {dimension_semantics = [#tpu.dimension_semantics<parallel>, #tpu.dimension_semantics<arbitrary>], iteration_bounds = array<i64: 1, 1>, scalar_prefetch = 1 : i64, scratch_operands = 0 : i64, tpu.core_type = #tpu.core_type<tc>, window_params = [{transform_indices = @transform_0, window_bounds = array<i64: 128, 32>}, {transform_indices = @transform_1, window_bounds = array<i64: 128, 32>}, {transform_indices = @transform_2, window_bounds = array<i64: 128, 128>}, {transform_indices = @transform_3, window_bounds = array<i64: 128, 1>}, {transform_indices = @transform_4, window_bounds = array<i64: 1, 128>}, {transform_indices = @transform_5, window_bounds = array<i64: 1, 8, 128>}]} {
    %c0_i32 = arith.constant 0 : i32
    %0 = arith.cmpi eq, %arg1, %c0_i32 : i32
    %1 = arith.extui %0 : i1 to i32
    %c0_i32_0 = arith.constant 0 : i32
    %2 = arith.cmpi ne, %1, %c0_i32_0 : i32
    scf.if %2 {
      %cst = arith.constant 0.000000e+00 : f32
      %10 = vector.broadcast %cst : f32 to vector<1x8x128xf32>
      %c0 = arith.constant 0 : index
      %c0_3 = arith.constant 0 : index
      %c0_4 = arith.constant 0 : index
      %11 = vector.load %arg8[%c0, %c0_3, %c0_4] : memref<1x8x128xf32, #tpu.memory_space<vmem>>, vector<1x8x128xf32>
      tpu.vector_store %arg8[%c0, %c0_3, %c0_4], %10 {strides = array<i32>} : memref<1x8x128xf32, #tpu.memory_space<vmem>>, vector<1x8x128xf32>,
    } else {
    }
    %c1_i32 = arith.constant 1 : i32
    %3 = arith.muli %arg0, %c1_i32 : i32
    %4 = arith.addi %3, %arg1 : i32
    %5 = arith.index_cast %4 : i32 to index
    %6 = memref.load %arg2[%5] : memref<1xi32, #tpu.memory_space<smem>>
    %c0_i32_1 = arith.constant 0 : i32
    %7 = arith.cmpi sgt, %6, %c0_i32_1 : i32
    %8 = arith.extui %7 : i1 to i32
    %c0_i32_2 = arith.constant 0 : i32
    %9 = arith.cmpi ne, %8, %c0_i32_2 : i32
    scf.if %9 {
      %c0 = arith.constant 0 : index
      %c0_3 = arith.constant 0 : index
      %10 = vector.load %arg3[%c0, %c0_3] : memref<128x32xf32, #tpu.memory_space<vmem>>, vector<128x32xf32>
      %c0_4 = arith.constant 0 : index
      %c0_5 = arith.constant 0 : index
      %11 = vector.load %arg4[%c0_4, %c0_5] : memref<128x32xf32, #tpu.memory_space<vmem>>, vector<128x32xf32>
      %cst = arith.constant dense<0.000000e+00> : vector<128x128xf32>
      %12 = tpu.matmul %10, %11, %cst {dimension_numbers = #tpu.dot_dimension_numbers<[1], [1], [0], [0], [0, 0, 1, 0], [], []>} : vector<128x32xf32>, vector<128x32xf32>, vector<128x128xf32> -> vector<128x128xf32>
      %c0_6 = arith.constant 0 : index
      %c0_7 = arith.constant 0 : index
      %13 = vector.load %arg6[%c0_6, %c0_7] : memref<128x1xi32, #tpu.memory_space<vmem>>, vector<128x1xi32>
      %c0_8 = arith.constant 0 : index
      %c0_9 = arith.constant 0 : index
      %14 = vector.load %arg7[%c0_8, %c0_9] : memref<1x128xi32, #tpu.memory_space<vmem>>, vector<1x128xi32>
      %15 = vector.broadcast %13 : vector<128x1xi32> to vector<128x128xi32>
      %16 = vector.broadcast %14 : vector<1x128xi32> to vector<128x128xi32>
      %17 = arith.addi %15, %16 : vector<128x128xi32>
      %c1_i32_10 = arith.constant 1 : i32
      %18 = vector.broadcast %c1_i32_10 : i32 to vector<128x128xi32>
      %19 = arith.cmpi eq, %17, %18 : vector<128x128xi32>
      %c0_11 = arith.constant 0 : index
      %c0_12 = arith.constant 0 : index
      %20 = vector.load %arg5[%c0_11, %c0_12] : memref<128x128xi8, #tpu.memory_space<vmem>>, vector<128x128xi8>
      %c0_i8 = arith.constant 0 : i8
      %21 = vector.broadcast %c0_i8 : i8 to vector<128x128xi8>
      %22 = arith.cmpi ne, %20, %21 : vector<128x128xi8>
      %23 = arith.andi %19, %22 : vector<128x128xi1>
      %cst_13 = arith.constant 0.000000e+00 : f32
      %24 = vector.broadcast %cst_13 : f32 to vector<128x128xf32>
      %25 = arith.subf %24, %12 : vector<128x128xf32>
      %cst_14 = arith.constant 0.000000e+00 : f32
      %26 = vector.broadcast %cst_14 : f32 to vector<128x128xf32>
      %27 = arith.maximumf %25, %26 : vector<128x128xf32>
      %28 = vector.broadcast %cst_14 : f32 to vector<128x128xf32>
      %29 = arith.subf %25, %28 : vector<128x128xf32>
      %30 = arith.cmpf one, %29, %29 : vector<128x128xf32>
      %31 = vector.broadcast %cst_14 : f32 to vector<128x128xf32>
      %32 = arith.addf %25, %31 : vector<128x128xf32>
      %33 = math.absf %29 : vector<128x128xf32>
      %cst_15 = arith.constant 0.000000e+00 : f32
      %34 = vector.broadcast %cst_15 : f32 to vector<128x128xf32>
      %35 = arith.subf %34, %33 : vector<128x128xf32>
      %36 = math.exp %35 : vector<128x128xf32>
      %37 = math.log1p %36 : vector<128x128xf32>
      %38 = arith.addf %27, %37 : vector<128x128xf32>
      %39 = arith.select %30, %32, %38 : vector<128x128xi1>, vector<128x128xf32>
      %cst_16 = arith.constant 34.5387764 : f32
      %40 = vector.broadcast %cst_16 : f32 to vector<128x128xf32>
      %41 = arith.minimumf %39, %40 : vector<128x128xf32>
      %cst_17 = arith.constant 0.000000e+00 : f32
      %42 = vector.broadcast %cst_17 : f32 to vector<128x128xf32>
      %43 = arith.select %23, %41, %42 : vector<128x128xi1>, vector<128x128xf32>
      %44 = vector.extract_strided_slice %43 {offsets = [0, 0], sizes = [8, 128], strides = [1, 1]} : vector<128x128xf32> to vector<8x128xf32>
      %45 = vector.extract_strided_slice %43 {offsets = [8, 0], sizes = [8, 128], strides = [1, 1]} : vector<128x128xf32> to vector<8x128xf32>
      %46 = vector.extract_strided_slice %43 {offsets = [16, 0], sizes = [8, 128], strides = [1, 1]} : vector<128x128xf32> to vector<8x128xf32>
      %47 = vector.extract_strided_slice %43 {offsets = [24, 0], sizes = [8, 128], strides = [1, 1]} : vector<128x128xf32> to vector<8x128xf32>
      %48 = vector.extract_strided_slice %43 {offsets = [32, 0], sizes = [8, 128], strides = [1, 1]} : vector<128x128xf32> to vector<8x128xf32>
      %49 = vector.extract_strided_slice %43 {offsets = [40, 0], sizes = [8, 128], strides = [1, 1]} : vector<128x128xf32> to vector<8x128xf32>
      %50 = vector.extract_strided_slice %43 {offsets = [48, 0], sizes = [8, 128], strides = [1, 1]} : vector<128x128xf32> to vector<8x128xf32>
      %51 = vector.extract_strided_slice %43 {offsets = [56, 0], sizes = [8, 128], strides = [1, 1]} : vector<128x128xf32> to vector<8x128xf32>
      %52 = vector.extract_strided_slice %43 {offsets = [64, 0], sizes = [8, 128], strides = [1, 1]} : vector<128x128xf32> to vector<8x128xf32>
      %53 = vector.extract_strided_slice %43 {offsets = [72, 0], sizes = [8, 128], strides = [1, 1]} : vector<128x128xf32> to vector<8x128xf32>
      %54 = vector.extract_strided_slice %43 {offsets = [80, 0], sizes = [8, 128], strides = [1, 1]} : vector<128x128xf32> to vector<8x128xf32>
      %55 = vector.extract_strided_slice %43 {offsets = [88, 0], sizes = [8, 128], strides = [1, 1]} : vector<128x128xf32> to vector<8x128xf32>
      %56 = vector.extract_strided_slice %43 {offsets = [96, 0], sizes = [8, 128], strides = [1, 1]} : vector<128x128xf32> to vector<8x128xf32>
      %57 = vector.extract_strided_slice %43 {offsets = [104, 0], sizes = [8, 128], strides = [1, 1]} : vector<128x128xf32> to vector<8x128xf32>
      %58 = vector.extract_strided_slice %43 {offsets = [112, 0], sizes = [8, 128], strides = [1, 1]} : vector<128x128xf32> to vector<8x128xf32>
      %59 = vector.extract_strided_slice %43 {offsets = [120, 0], sizes = [8, 128], strides = [1, 1]} : vector<128x128xf32> to vector<8x128xf32>
      %60 = arith.addf %44, %45 : vector<8x128xf32>
      %61 = arith.addf %46, %47 : vector<8x128xf32>
      %62 = arith.addf %48, %49 : vector<8x128xf32>
      %63 = arith.addf %50, %51 : vector<8x128xf32>
      %64 = arith.addf %52, %53 : vector<8x128xf32>
      %65 = arith.addf %54, %55 : vector<8x128xf32>
      %66 = arith.addf %56, %57 : vector<8x128xf32>
      %67 = arith.addf %58, %59 : vector<8x128xf32>
      %68 = arith.addf %60, %61 : vector<8x128xf32>
      %69 = arith.addf %62, %63 : vector<8x128xf32>
      %70 = arith.addf %64, %65 : vector<8x128xf32>
      %71 = arith.addf %66, %67 : vector<8x128xf32>
      %72 = arith.addf %68, %69 : vector<8x128xf32>
      %73 = arith.addf %70, %71 : vector<8x128xf32>
      %74 = arith.addf %72, %73 : vector<8x128xf32>
      %c0_18 = arith.constant 0 : index
      %c0_19 = arith.constant 0 : index
      %c0_20 = arith.constant 0 : index
      %75 = vector.load %arg8[%c0_18, %c0_19, %c0_20] : memref<1x8x128xf32, #tpu.memory_space<vmem>>, vector<1x8x128xf32>
      %76 = vector.shape_cast %75 : vector<1x8x128xf32> to vector<8x128xf32>
      %77 = arith.addf %76, %74 : vector<8x128xf32>
      %c0_21 = arith.constant 0 : index
      %c0_22 = arith.constant 0 : index
      %c0_23 = arith.constant 0 : index
      %78 = vector.load %arg8[%c0_21, %c0_22, %c0_23] : memref<1x8x128xf32, #tpu.memory_space<vmem>>, vector<1x8x128xf32>
      %79 = vector.shape_cast %78 : vector<1x8x128xf32> to vector<8x128xf32>
      %80 = vector.shape_cast %77 : vector<8x128xf32> to vector<1x8x128xf32>
      tpu.vector_store %arg8[%c0_21, %c0_22, %c0_23], %80 {strides = array<i32>} : memref<1x8x128xf32, #tpu.memory_space<vmem>>, vector<1x8x128xf32>,
    } else {
    }
    return
  }
  func.func @transform_0(%arg0: i32, %arg1: i32, %arg2: memref<1xi32, #tpu.memory_space<smem>>) -> (i32, i32) {
    %c0_i32 = arith.constant 0 : i32
    %c0_i32_0 = arith.constant 0 : i32
    return %arg0, %c0_i32 : i32, i32
  }
  func.func @transform_1(%arg0: i32, %arg1: i32, %arg2: memref<1xi32, #tpu.memory_space<smem>>) -> (i32, i32) {
    %c0_i32 = arith.constant 0 : i32
    %c0_i32_0 = arith.constant 0 : i32
    return %arg1, %c0_i32 : i32, i32
  }
  func.func @transform_2(%arg0: i32, %arg1: i32, %arg2: memref<1xi32, #tpu.memory_space<smem>>) -> (i32, i32) {
    %c0_i32 = arith.constant 0 : i32
    return %arg0, %arg1 : i32, i32
  }
  func.func @transform_3(%arg0: i32, %arg1: i32, %arg2: memref<1xi32, #tpu.memory_space<smem>>) -> (i32, i32) {
    %c0_i32 = arith.constant 0 : i32
    %c0_i32_0 = arith.constant 0 : i32
    return %arg0, %c0_i32 : i32, i32
  }
  func.func @transform_4(%arg0: i32, %arg1: i32, %arg2: memref<1xi32, #tpu.memory_space<smem>>) -> (i32, i32) {
    %c0_i32 = arith.constant 0 : i32
    %c0_i32_0 = arith.constant 0 : i32
    return %c0_i32, %arg1 : i32, i32
  }
  func.func @transform_5(%arg0: i32, %arg1: i32, %arg2: memref<1xi32, #tpu.memory_space<smem>>) -> (i32, i32, i32) {
    %c0_i32 = arith.constant 0 : i32
    %c0_i32_0 = arith.constant 0 : i32
    %c0_i32_1 = arith.constant 0 : i32
    return %arg0, %c0_i32, %c0_i32_0 : i32, i32, i32
  }
}

</mosaic_0001>

<llo_original>
// kernel: tpu_custom_call.1
$region0: #{tpu_custom_call.1}
  #allocation0 [shape = 'u32[]', space=smem, size = 0x4, offset = 0x4, fixed_abs, tag = 'smem constant byte address 0x4 - core index']
  #allocation1 [shape = 'u32[144,128]{1,0:T(1,128)}', space=vmem, size = 0x12000, scoped, tag = 'internal scratch']
  #allocation2 [shape = 's32[1]{0}', space=sflag, size = 0x4, scoped, tag = 'scoped memory for tpu_custom_call.1']
  #allocation3 [shape = 's32[1]{0:T(128)S(6)}', space=smem, size = 0x200, scoped, tag = 'prefetched SMEM operand 0']
  %s0 = inlined_call_operand.<no memory space> [shape: s32[1], index: 0, kind: input, shape index: {}]
  %s1 = inlined_call_operand.vmem [shape: f32[128,32], index: 1, kind: input, shape index: {}]
  %s2 = inlined_call_operand.vmem [shape: f32[128,32], index: 2, kind: input, shape index: {}]
  %s3 = inlined_call_operand.vmem [shape: s8[128,128], index: 3, kind: input, shape index: {}]
  %s4 = inlined_call_operand.vmem [shape: s32[128,1], index: 4, kind: input, shape index: {}]
  %s5 = inlined_call_operand.vmem [shape: s32[1,128], index: 5, kind: input, shape index: {}]
  %s6 = inlined_call_operand.hbm [shape: f32[1,8,128], index: 6, kind: output, shape index: {}]
  %s7 = sld [smem:[#allocation0]]
  $region38: #{tpu_custom_call.1} parent=0
    _
  %s9 = ssub.s32 1, %s7
  %s10 = scalar_select 0, %s9, %s7
  %11 = sst [smem:[#allocation3]] %s0
  $region1: #{tpu_custom_call.1} parent=0
    #allocation4 [shape = 'u8[4096]{0}', space=vmem, size = 0x1000, scoped, tag = 'output window, operand 0, single buffered']
    #allocation5 [shape = 's32[1]{0}', space=sflag, size = 0x4, scoped, tag = 'scoped memory for tpu_custom_call.1']
    %12 = vsyncpa [#allocation5], 0
    // Predicated region
    $region2: #{tpu_custom_call.1} parent=1 // pred_check
      _
    $region3: #{tpu_custom_call.1} parent=1 // pred_check_branch
      %14 = sbr.rel (0) target = $region5
    $region4: #{tpu_custom_call.1} parent=1 // pred_region
      _
    $region5: #{tpu_custom_call.1} parent=1 // pred_fallthru
      _
    // Predicated region
    $region6: #{tpu_custom_call.1} parent=1 // pred_check
      _
    $region7: #{tpu_custom_call.1} parent=1 // pred_check_branch
      %16 = sbr.rel (0) target = $region9
    $region8: #{tpu_custom_call.1} parent=1 // pred_region
      _
    $region9: #{tpu_custom_call.1} parent=1 // pred_fallthru
      _
    // Predicated region
    $region10: #{tpu_custom_call.1} parent=1 // pred_check
      _
    $region11: #{tpu_custom_call.1} parent=1 // pred_check_branch
      %18 = sbr.rel (0) target = $region13
    $region12: #{tpu_custom_call.1} parent=1 // pred_region
      _
    $region13: #{tpu_custom_call.1} parent=1 // pred_fallthru
      _
    // Predicated region
    $region14: #{tpu_custom_call.1} parent=1 // pred_check
      _
    $region15: #{tpu_custom_call.1} parent=1 // pred_check_branch
      %20 = sbr.rel (0) target = $region17
    $region16: #{tpu_custom_call.1} parent=1 // pred_region
      _
    $region17: #{tpu_custom_call.1} parent=1 // pred_fallthru
      _
    // Predicated region
    $region18: #{tpu_custom_call.1} parent=1 // pred_check
      _
    $region19: #{tpu_custom_call.1} parent=1 // pred_check_branch
      %22 = sbr.rel (0) target = $region21
    $region20: #{tpu_custom_call.1} parent=1 // pred_region
      _
    $region21: #{tpu_custom_call.1} parent=1 // pred_fallthru
      _
    %p25 = scmp.eq.s32.totalorder 0, 0
    // Predicated region
    $region22: #{tpu_custom_call.1} parent=1 // pred_check
      %p26 = pneg %p25
    $region23: #{tpu_custom_call.1} parent=1 // pred_check_branch
      %28 = sbr.rel (%p26) target = $region25
    $region24: #{tpu_custom_call.1} parent=1 // pred_region
      %29 = vst [vmem:[#allocation4] sm:$0xff] 0.0
    $region25: #{tpu_custom_call.1} parent=1 // pred_fallthru
      _
    %s30 = sadd.s32 0, 0
    %s31 = sld [smem:[#allocation3 + %s30]]
    %p32 = scmp.gt.s32.totalorder %s31, 0
    // Predicated region
    $region26: #{tpu_custom_call.1} parent=1 // pred_check
      %p33 = pneg %p32
    $region27: #{tpu_custom_call.1} parent=1 // pred_check_branch
      %35 = sbr.rel (%p33) target = $region29
    $region28: #{tpu_custom_call.1} parent=1 // pred_region
      %v36 = vld [vmem:[%s1] sm:$0xff]
      %v37 = vld [vmem:[%s1 + $0x8] sm:$0xff]
      %v38 = vld [vmem:[%s1 + $0x10] sm:$0xff]
      %v39 = vld [vmem:[%s1 + $0x18] sm:$0xff]
      %v40 = vld [vmem:[%s1 + $0x20] sm:$0xff]
      %v41 = vld [vmem:[%s1 + $0x28] sm:$0xff]
      %v42 = vld [vmem:[%s1 + $0x30] sm:$0xff]
      %v43 = vld [vmem:[%s1 + $0x38] sm:$0xff]
      %v44 = vld [vmem:[%s1 + $0x40] sm:$0xff]
      %v45 = vld [vmem:[%s1 + $0x48] sm:$0xff]
      %v46 = vld [vmem:[%s1 + $0x50] sm:$0xff]
      %v47 = vld [vmem:[%s1 + $0x58] sm:$0xff]
      %v48 = vld [vmem:[%s1 + $0x60] sm:$0xff]
      %v49 = vld [vmem:[%s1 + $0x68] sm:$0xff]
      %v50 = vld [vmem:[%s1 + $0x70] sm:$0xff]
      %v51 = vld [vmem:[%s1 + $0x78] sm:$0xff]
      %v52 = vld [vmem:[%s2] sm:$0xff]
      %v53 = vld [vmem:[%s2 + $0x8] sm:$0xff]
      %v54 = vld [vmem:[%s2 + $0x10] sm:$0xff]
      %v55 = vld [vmem:[%s2 + $0x18] sm:$0xff]
      %v56 = vld [vmem:[%s2 + $0x20] sm:$0xff]
      %v57 = vld [vmem:[%s2 + $0x28] sm:$0xff]
      %v58 = vld [vmem:[%s2 + $0x30] sm:$0xff]
      %v59 = vld [vmem:[%s2 + $0x38] sm:$0xff]
      %v60 = vld [vmem:[%s2 + $0x40] sm:$0xff]
      %v61 = vld [vmem:[%s2 + $0x48] sm:$0xff]
      %v62 = vld [vmem:[%s2 + $0x50] sm:$0xff]
      %v63 = vld [vmem:[%s2 + $0x58] sm:$0xff]
      %v64 = vld [vmem:[%s2 + $0x60] sm:$0xff]
      %v65 = vld [vmem:[%s2 + $0x68] sm:$0xff]
      %v66 = vld [vmem:[%s2 + $0x70] sm:$0xff]
      %v67 = vld [vmem:[%s2 + $0x78] sm:$0xff]
      %vm68 = vcmask 261120
      %v70 = vsel %vm68, %v36, 0
      %v73 = vsel %vm68, %v37, 0
      %v76 = vsel %vm68, %v38, 0
      %v79 = vsel %vm68, %v39, 0
      %v82 = vsel %vm68, %v40, 0
      %v85 = vsel %vm68, %v41, 0
      %v88 = vsel %vm68, %v42, 0
      %v91 = vsel %vm68, %v43, 0
      %v94 = vsel %vm68, %v44, 0
      %v97 = vsel %vm68, %v45, 0
      %v100 = vsel %vm68, %v46, 0
      %v103 = vsel %vm68, %v47, 0
      %v106 = vsel %vm68, %v48, 0
      %v109 = vsel %vm68, %v49, 0
      %v112 = vsel %vm68, %v50, 0
      %v115 = vsel %vm68, %v51, 0
      %v118 = vsel %vm68, %v52, 0
      %v121 = vsel %vm68, %v53, 0
      %v124 = vsel %vm68, %v54, 0
      %v127 = vsel %vm68, %v55, 0
      %v130 = vsel %vm68, %v56, 0
      %v133 = vsel %vm68, %v57, 0
      %v136 = vsel %vm68, %v58, 0
      %v139 = vsel %vm68, %v59, 0
      %v142 = vsel %vm68, %v60, 0
      %v145 = vsel %vm68, %v61, 0
      %v148 = vsel %vm68, %v62, 0
      %v151 = vsel %vm68, %v63, 0
      %v154 = vsel %vm68, %v64, 0
      %v157 = vsel %vm68, %v65, 0
      %v160 = vsel %vm68, %v66, 0
      %v163 = vsel %vm68, %v67, 0
      %165 = vmatprep.subr.mxu0 0.0
      %166 = vmatpush1.xpose.msra.mxu0 %v118
      %167 = vmatprep.subr.mxu0 0.0
      %168 = vmatpush1.xpose.msra.mxu0 %v121
      %169 = vmatprep.subr.mxu0 0.0
      %170 = vmatpush1.xpose.msra.mxu0 %v124
      %171 = vmatprep.subr.mxu0 0.0
      %172 = vmatpush1.xpose.msra.mxu0 %v127
      %173 = vmatprep.subr.mxu0 0.0
      %174 = vmatpush1.xpose.msra.mxu0 %v130
      %175 = vmatprep.subr.mxu0 0.0
      %176 = vmatpush1.xpose.msra.mxu0 %v133
      %177 = vmatprep.subr.mxu0 0.0
      %178 = vmatpush1.xpose.msra.mxu0 %v136
      %179 = vmatprep.subr.mxu0 0.0
      %180 = vmatpush1.xpose.msra.mxu0 %v139
      %181 = vmatprep.subr.mxu0 0.0
      %182 = vmatpush1.xpose.msra.mxu0 %v142
      %183 = vmatprep.subr.mxu0 0.0
      %184 = vmatpush1.xpose.msra.mxu0 %v145
      %185 = vmatprep.subr.mxu0 0.0
      %186 = vmatpush1.xpose.msra.mxu0 %v148
      %187 = vmatprep.subr.mxu0 0.0
      %188 = vmatpush1.xpose.msra.mxu0 %v151
      %189 = vmatprep.subr.mxu0 0.0
      %190 = vmatpush1.xpose.msra.mxu0 %v154
      %191 = vmatprep.subr.mxu0 0.0
      %192 = vmatpush1.xpose.msra.mxu0 %v157
      %193 = vmatprep.subr.mxu0 0.0
      %194 = vmatpush1.xpose.msra.mxu0 %v160
      %195 = vmatprep.subr.mxu0 0.0
      %196 = vmatpush1.xpose.msra.mxu0 %v163
      %197 = vmatprep.subr.mxu0 0.0
      %198 = vmatpush1.xpose.msra.mxu0 0.0
      %199 = vmatprep.subr.mxu0 0.0
      %200 = vmatpush1.xpose.msra.mxu0 0.0
      %201 = vmatprep.subr.mxu0 0.0
      %202 = vmatpush1.xpose.msra.mxu0 0.0
      %203 = vmatprep.subr.mxu0 0.0
      %204 = vmatpush1.xpose.msra.mxu0 0.0
      %205 = vmatprep.subr.mxu0 0.0
      %206 = vmatpush1.xpose.msra.mxu0 0.0
      %207 = vmatprep.subr.mxu0 0.0
      %208 = vmatpush1.xpose.msra.mxu0 0.0
      %209 = vmatprep.subr.mxu0 0.0
      %210 = vmatpush1.xpose.msra.mxu0 0.0
      %211 = vmatprep.subr.mxu0 0.0
      %212 = vmatpush1.xpose.msra.mxu0 0.0
      %213 = vmatprep.subr.mxu0 0.0
      %214 = vmatpush1.xpose.msra.mxu0 0.0
      %215 = vmatprep.subr.mxu0 0.0
      %216 = vmatpush1.xpose.msra.mxu0 0.0
      %217 = vmatprep.subr.mxu0 0.0
      %218 = vmatpush1.xpose.msra.mxu0 0.0
      %219 = vmatprep.subr.mxu0 0.0
      %220 = vmatpush1.xpose.msra.mxu0 0.0
      %221 = vmatprep.subr.mxu0 0.0
      %222 = vmatpush1.xpose.msra.mxu0 0.0
      %223 = vmatprep.subr.mxu0 0.0
      %224 = vmatpush1.xpose.msra.mxu0 0.0
      %225 = vmatprep.subr.mxu0 0.0
      %226 = vmatpush1.xpose.msra.mxu0 0.0
      %227 = vmatprep.subr.mxu0 0.0
      %228 = vmatpush1.xpose.msra.mxu0 0.0
      %229 = vmatprep.mubr.f32.mxu0 0.0
      %230 = vmatmul.mubr.f32.gmra.mrb[0].mxu0 %v70
      %v231 = vpop.f32.mrb[0].mxu0
      %v232 = vadd.f32 0.0, %v231
      %v233 = vpop.f32.mrb[0].mxu0
      %234 = vmatprep.mubr.f32.mxu0 0.0
      %235 = vmatmul.mubr.f32.gmra.mrb[0].mxu0 %v73
      %v236 = vpop.f32.mrb[0].mxu0
      %v237 = vadd.f32 0.0, %v236
      %v238 = vpop.f32.mrb[0].mxu0
      %239 = vmatprep.mubr.f32.mxu0 0.0
      %240 = vmatmul.mubr.f32.gmra.mrb[0].mxu0 %v76
      %v241 = vpop.f32.mrb[0].mxu0
      %v242 = vadd.f32 0.0, %v241
      %v243 = vpop.f32.mrb[0].mxu0
      %244 = vmatprep.mubr.f32.mxu0 0.0
      %245 = vmatmul.mubr.f32.gmra.mrb[0].mxu0 %v79
      %v246 = vpop.f32.mrb[0].mxu0
      %v247 = vadd.f32 0.0, %v246
      %v248 = vpop.f32.mrb[0].mxu0
      %249 = vmatprep.mubr.f32.mxu0 0.0
      %250 = vmatmul.mubr.f32.gmra.mrb[0].mxu0 %v82
      %v251 = vpop.f32.mrb[0].mxu0
      %v252 = vadd.f32 0.0, %v251
      %v253 = vpop.f32.mrb[0].mxu0
      %254 = vmatprep.mubr.f32.mxu0 0.0
      %255 = vmatmul.mubr.f32.gmra.mrb[0].mxu0 %v85
      %v256 = vpop.f32.mrb[0].mxu0
      %v257 = vadd.f32 0.0, %v256
      %v258 = vpop.f32.mrb[0].mxu0
      %259 = vmatprep.mubr.f32.mxu0 0.0
      %260 = vmatmul.mubr.f32.gmra.mrb[0].mxu0 %v88
      %v261 = vpop.f32.mrb[0].mxu0
      %v262 = vadd.f32 0.0, %v261
      %v263 = vpop.f32.mrb[0].mxu0
      %264 = vmatprep.mubr.f32.mxu0 0.0
      %265 = vmatmul.mubr.f32.gmra.mrb[0].mxu0 %v91
      %v266 = vpop.f32.mrb[0].mxu0
      %v267 = vadd.f32 0.0, %v266
      %v268 = vpop.f32.mrb[0].mxu0
      %269 = vmatprep.mubr.f32.mxu0 0.0
      %270 = vmatmul.mubr.f32.gmra.mrb[0].mxu0 %v94
      %v271 = vpop.f32.mrb[0].mxu0
      %v272 = vadd.f32 0.0, %v271
      %v273 = vpop.f32.mrb[0].mxu0
      %274 = vmatprep.mubr.f32.mxu0 0.0
      %275 = vmatmul.mubr.f32.gmra.mrb[0].mxu0 %v97
      %v276 = vpop.f32.mrb[0].mxu0
      %v277 = vadd.f32 0.0, %v276
      %v278 = vpop.f32.mrb[0].mxu0
      %279 = vmatprep.mubr.f32.mxu0 0.0
      %280 = vmatmul.mubr.f32.gmra.mrb[0].mxu0 %v100
      %v281 = vpop.f32.mrb[0].mxu0
      %v282 = vadd.f32 0.0, %v281
      %v283 = vpop.f32.mrb[0].mxu0
      %284 = vmatprep.mubr.f32.mxu0 0.0
      %285 = vmatmul.mubr.f32.gmra.mrb[0].mxu0 %v103
      %v286 = vpop.f32.mrb[0].mxu0
      %v287 = vadd.f32 0.0, %v286
      %v288 = vpop.f32.mrb[0].mxu0
      %289 = vmatprep.mubr.f32.mxu0 0.0
      %290 = vmatmul.mubr.f32.gmra.mrb[0].mxu0 %v106
      %v291 = vpop.f32.mrb[0].mxu0
      %v292 = vadd.f32 0.0, %v291
      %v293 = vpop.f32.mrb[0].mxu0
      %294 = vmatprep.mubr.f32.mxu0 0.0
      %295 = vmatmul.mubr.f32.gmra.mrb[0].mxu0 %v109
      %v296 = vpop.f32.mrb[0].mxu0
      %v297 = vadd.f32 0.0, %v296
      %v298 = vpop.f32.mrb[0].mxu0
      %299 = vmatprep.mubr.f32.mxu0 0.0
      %300 = vmatmul.mubr.f32.gmra.mrb[0].mxu0 %v112
      %v301 = vpop.f32.mrb[0].mxu0
      %v302 = vadd.f32 0.0, %v301
      %v303 = vpop.f32.mrb[0].mxu0
      %304 = vmatprep.mubr.f32.mxu0 0.0
      %305 = vmatmul.mubr.f32.gmra.mrb[0].mxu0 %v115
      %v306 = vpop.f32.mrb[0].mxu0
      %v307 = vadd.f32 0.0, %v306
      %v308 = vpop.f32.mrb[0].mxu0
      %309 = vdwg.mxu0
      %v310 = vld [vmem:[%s4] sm:$0xff]
      %v311 = vld [vmem:[%s4 + $0x8] sm:$0xff]
      %v312 = vld [vmem:[%s4 + $0x10] sm:$0xff]
      %v313 = vld [vmem:[%s4 + $0x18] sm:$0xff]
      %v314 = vld [vmem:[%s4 + $0x20] sm:$0xff]
      %v315 = vld [vmem:[%s4 + $0x28] sm:$0xff]
      %v316 = vld [vmem:[%s4 + $0x30] sm:$0xff]
      %v317 = vld [vmem:[%s4 + $0x38] sm:$0xff]
      %v318 = vld [vmem:[%s4 + $0x40] sm:$0xff]
      %v319 = vld [vmem:[%s4 + $0x48] sm:$0xff]
      %v320 = vld [vmem:[%s4 + $0x50] sm:$0xff]
      %v321 = vld [vmem:[%s4 + $0x58] sm:$0xff]
      %v322 = vld [vmem:[%s4 + $0x60] sm:$0xff]
      %v323 = vld [vmem:[%s4 + $0x68] sm:$0xff]
      %v324 = vld [vmem:[%s4 + $0x70] sm:$0xff]
      %v325 = vld [vmem:[%s4 + $0x78] sm:$0xff]
      %v326 = vld [vmem:[%s5] sm:$0x1]
      %327 = vset.pattern.permute.xlu0 0
      %328 = vperm.xlu0 %327, %v310
      %v329 = vpop.permute.xlu0 %328
      %330 = vset.pattern.permute.xlu0 0
      %331 = vperm.xlu0 %330, %v311
      %v332 = vpop.permute.xlu0 %331
      %333 = vset.pattern.permute.xlu0 0
      %334 = vperm.xlu0 %333, %v312
      %v335 = vpop.permute.xlu0 %334
      %336 = vset.pattern.permute.xlu0 0
      %337 = vperm.xlu0 %336, %v313
      %v338 = vpop.permute.xlu0 %337
      %339 = vset.pattern.permute.xlu0 0
      %340 = vperm.xlu0 %339, %v314
      %v341 = vpop.permute.xlu0 %340
      %342 = vset.pattern.permute.xlu0 0
      %343 = vperm.xlu0 %342, %v315
      %v344 = vpop.permute.xlu0 %343
      %345 = vset.pattern.permute.xlu0 0
      %346 = vperm.xlu0 %345, %v316
      %v347 = vpop.permute.xlu0 %346
      %348 = vset.pattern.permute.xlu0 0
      %349 = vperm.xlu0 %348, %v317
      %v350 = vpop.permute.xlu0 %349
      %351 = vset.pattern.permute.xlu0 0
      %352 = vperm.xlu0 %351, %v318
      %v353 = vpop.permute.xlu0 %352
      %354 = vset.pattern.permute.xlu0 0
      %355 = vperm.xlu0 %354, %v319
      %v356 = vpop.permute.xlu0 %355
      %357 = vset.pattern.permute.xlu0 0
      %358 = vperm.xlu0 %357, %v320
      %v359 = vpop.permute.xlu0 %358
      %360 = vset.pattern.permute.xlu0 0
      %361 = vperm.xlu0 %360, %v321
      %v362 = vpop.permute.xlu0 %361
      %363 = vset.pattern.permute.xlu0 0
      %364 = vperm.xlu0 %363, %v322
      %v365 = vpop.permute.xlu0 %364
      %366 = vset.pattern.permute.xlu0 0
      %367 = vperm.xlu0 %366, %v323
      %v368 = vpop.permute.xlu0 %367
      %369 = vset.pattern.permute.xlu0 0
      %370 = vperm.xlu0 %369, %v324
      %v371 = vpop.permute.xlu0 %370
      %372 = vset.pattern.permute.xlu0 0
      %373 = vperm.xlu0 %372, %v325
      %v374 = vpop.permute.xlu0 %373
      %v375 = vlaneseq
      %v376 = vshrl.u32 %v375, 7
      %v377 = vsub.s32 0, %v376
      %v378 = vrot.slane %v326, %v377
      %v379 = vadd.s32 %v329, %v378
      %v380 = vadd.s32 %v332, %v378
      %v381 = vadd.s32 %v335, %v378
      %v382 = vadd.s32 %v338, %v378
      %v383 = vadd.s32 %v341, %v378
      %v384 = vadd.s32 %v344, %v378
      %v385 = vadd.s32 %v347, %v378
      %v386 = vadd.s32 %v350, %v378
      %v387 = vadd.s32 %v353, %v378
      %v388 = vadd.s32 %v356, %v378
      %v389 = vadd.s32 %v359, %v378
      %v390 = vadd.s32 %v362, %v378
      %v391 = vadd.s32 %v365, %v378
      %v392 = vadd.s32 %v368, %v378
      %v393 = vadd.s32 %v371, %v378
      %v394 = vadd.s32 %v374, %v378
      %vm395 = vcmp.eq.s32.totalorder %v379, 1
      %vm396 = vcmp.eq.s32.totalorder %v380, 1
      %vm397 = vcmp.eq.s32.totalorder %v381, 1
      %vm398 = vcmp.eq.s32.totalorder %v382, 1
      %vm399 = vcmp.eq.s32.totalorder %v383, 1
      %vm400 = vcmp.eq.s32.totalorder %v384, 1
      %vm401 = vcmp.eq.s32.totalorder %v385, 1
      %vm402 = vcmp.eq.s32.totalorder %v386, 1
      %vm403 = vcmp.eq.s32.totalorder %v387, 1
      %vm404 = vcmp.eq.s32.totalorder %v388, 1
      %vm405 = vcmp.eq.s32.totalorder %v389, 1
      %vm406 = vcmp.eq.s32.totalorder %v390, 1
      %vm407 = vcmp.eq.s32.totalorder %v391, 1
      %vm408 = vcmp.eq.s32.totalorder %v392, 1
      %vm409 = vcmp.eq.s32.totalorder %v393, 1
      %vm410 = vcmp.eq.s32.totalorder %v394, 1
      %v411 = vld [vmem:[%s3] sm:$0xff]
      %v412 = vld [vmem:[%s3 + $0x8] sm:$0xff]
      %v413 = vld [vmem:[%s3 + $0x10] sm:$0xff]
      %v414 = vld [vmem:[%s3 + $0x18] sm:$0xff]
      %vm415 = vnez %v411
      %vm416 = vnez %v412
      %vm417 = vnez %v413
      %vm418 = vnez %v414
      %v419 = vsel %vm415, 16843009, 0
      %v420 = vsel %vm416, 16843009, 0
      %v421 = vsel %vm417, 16843009, 0
      %v422 = vsel %vm418, 16843009, 0
      %v423 = vunpack.c.0.s8 %v419
      %v424 = vunpack.c.1.s8 %v419
      %v425 = vunpack.c.2.s8 %v419
      %v426 = vunpack.c.3.s8 %v419
      %v427 = vunpack.c.0.s8 %v420
      %v428 = vunpack.c.1.s8 %v420
      %v429 = vunpack.c.2.s8 %v420
      %v430 = vunpack.c.3.s8 %v420
      %v431 = vunpack.c.0.s8 %v421
      %v432 = vunpack.c.1.s8 %v421
      %v433 = vunpack.c.2.s8 %v421
      %v434 = vunpack.c.3.s8 %v421
      %v435 = vunpack.c.0.s8 %v422
      %v436 = vunpack.c.1.s8 %v422
      %v437 = vunpack.c.2.s8 %v422
      %v438 = vunpack.c.3.s8 %v422
      %v439 = vpack.c.b16 %v423, %v423
      %v440 = vpack.c.b8 %v439, %v439
      %v441 = vpack.c.b16 %v424, %v424
      %v442 = vpack.c.b8 %v441, %v441
      %v443 = vpack.c.b16 %v425, %v425
      %v444 = vpack.c.b8 %v443, %v443
      %v445 = vpack.c.b16 %v426, %v426
      %v446 = vpack.c.b8 %v445, %v445
      %v447 = vpack.c.b16 %v427, %v427
      %v448 = vpack.c.b8 %v447, %v447
      %v449 = vpack.c.b16 %v428, %v428
      %v450 = vpack.c.b8 %v449, %v449
      %v451 = vpack.c.b16 %v429, %v429
      %v452 = vpack.c.b8 %v451, %v451
      %v453 = vpack.c.b16 %v430, %v430
      %v454 = vpack.c.b8 %v453, %v453
      %v455 = vpack.c.b16 %v431, %v431
      %v456 = vpack.c.b8 %v455, %v455
      %v457 = vpack.c.b16 %v432, %v432
      %v458 = vpack.c.b8 %v457, %v457
      %v459 = vpack.c.b16 %v433, %v433
      %v460 = vpack.c.b8 %v459, %v459
      %v461 = vpack.c.b16 %v434, %v434
      %v462 = vpack.c.b8 %v461, %v461
      %v463 = vpack.c.b16 %v435, %v435
      %v464 = vpack.c.b8 %v463, %v463
      %v465 = vpack.c.b16 %v436, %v436
      %v466 = vpack.c.b8 %v465, %v465
      %v467 = vpack.c.b16 %v437, %v437
      %v468 = vpack.c.b8 %v467, %v467
      %v469 = vpack.c.b16 %v438, %v438
      %v470 = vpack.c.b8 %v469, %v469
      %vm471 = vnez %v440
      %vm472 = vnez %v442
      %vm473 = vnez %v444
      %vm474 = vnez %v446
      %vm475 = vnez %v448
      %vm476 = vnez %v450
      %vm477 = vnez %v452
      %vm478 = vnez %v454
      %vm479 = vnez %v456
      %vm480 = vnez %v458
      %vm481 = vnez %v460
      %vm482 = vnez %v462
      %vm483 = vnez %v464
      %vm484 = vnez %v466
      %vm485 = vnez %v468
      %vm486 = vnez %v470
      %v487 = vsel %vm471, 16843009, 0
      %v488 = vsel %vm472, 16843009, 0
      %v489 = vsel %vm473, 16843009, 0
      %v490 = vsel %vm474, 16843009, 0
      %v491 = vsel %vm475, 16843009, 0
      %v492 = vsel %vm476, 16843009, 0
      %v493 = vsel %vm477, 16843009, 0
      %v494 = vsel %vm478, 16843009, 0
      %v495 = vsel %vm479, 16843009, 0
      %v496 = vsel %vm480, 16843009, 0
      %v497 = vsel %vm481, 16843009, 0
      %v498 = vsel %vm482, 16843009, 0
      %v499 = vsel %vm483, 16843009, 0
      %v500 = vsel %vm484, 16843009, 0
      %v501 = vsel %vm485, 16843009, 0
      %v502 = vsel %vm486, 16843009, 0
      %v503 = vunpack.c.0.s8 %v487
      %v504 = vunpack.c.0.s8 %v488
      %v505 = vunpack.c.0.s8 %v489
      %v506 = vunpack.c.0.s8 %v490
      %v507 = vunpack.c.0.s8 %v491
      %v508 = vunpack.c.0.s8 %v492
      %v509 = vunpack.c.0.s8 %v493
      %v510 = vunpack.c.0.s8 %v494
      %v511 = vunpack.c.0.s8 %v495
      %v512 = vunpack.c.0.s8 %v496
      %v513 = vunpack.c.0.s8 %v497
      %v514 = vunpack.c.0.s8 %v498
      %v515 = vunpack.c.0.s8 %v499
      %v516 = vunpack.c.0.s8 %v500
      %v517 = vunpack.c.0.s8 %v501
      %v518 = vunpack.c.0.s8 %v502
      %vm519 = vcmp.ne.s32.totalorder %v503, 0
      %vm520 = vcmp.ne.s32.totalorder %v504, 0
      %vm521 = vcmp.ne.s32.totalorder %v505, 0
      %vm522 = vcmp.ne.s32.totalorder %v506, 0
      %vm523 = vcmp.ne.s32.totalorder %v507, 0
      %vm524 = vcmp.ne.s32.totalorder %v508, 0
      %vm525 = vcmp.ne.s32.totalorder %v509, 0
      %vm526 = vcmp.ne.s32.totalorder %v510, 0
      %vm527 = vcmp.ne.s32.totalorder %v511, 0
      %vm528 = vcmp.ne.s32.totalorder %v512, 0
      %vm529 = vcmp.ne.s32.totalorder %v513, 0
      %vm530 = vcmp.ne.s32.totalorder %v514, 0
      %vm531 = vcmp.ne.s32.totalorder %v515, 0
      %vm532 = vcmp.ne.s32.totalorder %v516, 0
      %vm533 = vcmp.ne.s32.totalorder %v517, 0
      %vm534 = vcmp.ne.s32.totalorder %v518, 0
      %vm535 = vmand %vm395, %vm519
      %vm536 = vmand %vm396, %vm520
      %vm537 = vmand %vm397, %vm521
      %vm538 = vmand %vm398, %vm522
      %vm539 = vmand %vm399, %vm523
      %vm540 = vmand %vm400, %vm524
      %vm541 = vmand %vm401, %vm525
      %vm542 = vmand %vm402, %vm526
      %vm543 = vmand %vm403, %vm527
      %vm544 = vmand %vm404, %vm528
      %vm545 = vmand %vm405, %vm529
      %vm546 = vmand %vm406, %vm530
      %vm547 = vmand %vm407, %vm531
      %vm548 = vmand %vm408, %vm532
      %vm549 = vmand %vm409, %vm533
      %vm550 = vmand %vm410, %vm534
      %v551 = vsub.f32 0.0, %v232
      %v552 = vsub.f32 0.0, %v237
      %v553 = vsub.f32 0.0, %v242
      %v554 = vsub.f32 0.0, %v247
      %v555 = vsub.f32 0.0, %v252
      %v556 = vsub.f32 0.0, %v257
      %v557 = vsub.f32 0.0, %v262
      %v558 = vsub.f32 0.0, %v267
      %v559 = vsub.f32 0.0, %v272
      %v560 = vsub.f32 0.0, %v277
      %v561 = vsub.f32 0.0, %v282
      %v562 = vsub.f32 0.0, %v287
      %v563 = vsub.f32 0.0, %v292
      %v564 = vsub.f32 0.0, %v297
      %v565 = vsub.f32 0.0, %v302
      %v566 = vsub.f32 0.0, %v307
      %v567 = vmax.f32 %v551, 0.0
      %v568 = vmax.f32 %v552, 0.0
      %v569 = vmax.f32 %v553, 0.0
      %v570 = vmax.f32 %v554, 0.0
      %v571 = vmax.f32 %v555, 0.0
      %v572 = vmax.f32 %v556, 0.0
      %v573 = vmax.f32 %v557, 0.0
      %v574 = vmax.f32 %v558, 0.0
      %v575 = vmax.f32 %v559, 0.0
      %v576 = vmax.f32 %v560, 0.0
      %v577 = vmax.f32 %v561, 0.0
      %v578 = vmax.f32 %v562, 0.0
      %v579 = vmax.f32 %v563, 0.0
      %v580 = vmax.f32 %v564, 0.0
      %v581 = vmax.f32 %v565, 0.0
      %v582 = vmax.f32 %v566, 0.0
      %vm583 = vcmp.ne.f32.partialorder %v551, %v551
      %vm584 = vcmp.ne.f32.partialorder %v552, %v552
      %vm585 = vcmp.ne.f32.partialorder %v553, %v553
      %vm586 = vcmp.ne.f32.partialorder %v554, %v554
      %vm587 = vcmp.ne.f32.partialorder %v555, %v555
      %vm588 = vcmp.ne.f32.partialorder %v556, %v556
      %vm589 = vcmp.ne.f32.partialorder %v557, %v557
      %vm590 = vcmp.ne.f32.partialorder %v558, %v558
      %vm591 = vcmp.ne.f32.partialorder %v559, %v559
      %vm592 = vcmp.ne.f32.partialorder %v560, %v560
      %vm593 = vcmp.ne.f32.partialorder %v561, %v561
      %vm594 = vcmp.ne.f32.partialorder %v562, %v562
      %vm595 = vcmp.ne.f32.partialorder %v563, %v563
      %vm596 = vcmp.ne.f32.partialorder %v564, %v564
      %vm597 = vcmp.ne.f32.partialorder %v565, %v565
      %vm598 = vcmp.ne.f32.partialorder %v566, %v566
      %v599 = vadd.f32 %v551, 0.0
      %v600 = vadd.f32 %v552, 0.0
      %v601 = vadd.f32 %v553, 0.0
      %v602 = vadd.f32 %v554, 0.0
      %v603 = vadd.f32 %v555, 0.0
      %v604 = vadd.f32 %v556, 0.0
      %v605 = vadd.f32 %v557, 0.0
      %v606 = vadd.f32 %v558, 0.0
      %v607 = vadd.f32 %v559, 0.0
      %v608 = vadd.f32 %v560, 0.0
      %v609 = vadd.f32 %v561, 0.0
      %v610 = vadd.f32 %v562, 0.0
      %v611 = vadd.f32 %v563, 0.0
      %v612 = vadd.f32 %v564, 0.0
      %v613 = vadd.f32 %v565, 0.0
      %v614 = vadd.f32 %v566, 0.0
      %v615 = vand.u32 2147483647, %v551
      %v616 = vand.u32 2147483647, %v552
      %v617 = vand.u32 2147483647, %v553
      %v618 = vand.u32 2147483647, %v554
      %v619 = vand.u32 2147483647, %v555
      %v620 = vand.u32 2147483647, %v556
      %v621 = vand.u32 2147483647, %v557
      %v622 = vand.u32 2147483647, %v558
      %v623 = vand.u32 2147483647, %v559
      %v624 = vand.u32 2147483647, %v560
      %v625 = vand.u32 2147483647, %v561
      %v626 = vand.u32 2147483647, %v562
      %v627 = vand.u32 2147483647, %v563
      %v628 = vand.u32 2147483647, %v564
      %v629 = vand.u32 2147483647, %v565
      %v630 = vand.u32 2147483647, %v566
      %v631 = vsub.f32 0.0, %v615
      %v632 = vsub.f32 0.0, %v616
      %v633 = vsub.f32 0.0, %v617
      %v634 = vsub.f32 0.0, %v618
      %v635 = vsub.f32 0.0, %v619
      %v636 = vsub.f32 0.0, %v620
      %v637 = vsub.f32 0.0, %v621
      %v638 = vsub.f32 0.0, %v622
      %v639 = vsub.f32 0.0, %v623
      %v640 = vsub.f32 0.0, %v624
      %v641 = vsub.f32 0.0, %v625
      %v642 = vsub.f32 0.0, %v626
      %v643 = vsub.f32 0.0, %v627
      %v644 = vsub.f32 0.0, %v628
      %v645 = vsub.f32 0.0, %v629
      %v646 = vsub.f32 0.0, %v630
      %v647 = vmul.f32 %v631, 1.442695
      %v648 = vpow.pop %v647
      %v649 = vmul.f32 %v632, 1.442695
      %v650 = vpow.pop %v649
      %v651 = vmul.f32 %v633, 1.442695
      %v652 = vpow.pop %v651
      %v653 = vmul.f32 %v634, 1.442695
      %v654 = vpow.pop %v653
      %v655 = vmul.f32 %v635, 1.442695
      %v656 = vpow.pop %v655
      %v657 = vmul.f32 %v636, 1.442695
      %v658 = vpow.pop %v657
      %v659 = vmul.f32 %v637, 1.442695
      %v660 = vpow.pop %v659
      %v661 = vmul.f32 %v638, 1.442695
      %v662 = vpow.pop %v661
      %v663 = vmul.f32 %v639, 1.442695
      %v664 = vpow.pop %v663
      %v665 = vmul.f32 %v640, 1.442695
      %v666 = vpow.pop %v665
      %v667 = vmul.f32 %v641, 1.442695
      %v668 = vpow.pop %v667
      %v669 = vmul.f32 %v642, 1.442695
      %v670 = vpow.pop %v669
      %v671 = vmul.f32 %v643, 1.442695
      %v672 = vpow.pop %v671
      %v673 = vmul.f32 %v644, 1.442695
      %v674 = vpow.pop %v673
      %v675 = vmul.f32 %v645, 1.442695
      %v676 = vpow.pop %v675
      %v677 = vmul.f32 %v646, 1.442695
      %v678 = vpow.pop %v677
      %v679 = vadd.f32 %v648, 1.0
      %v680 = vlog2.pop %v679
      %v681 = vmul.f32 %v680, 0.6931472
      %v682 = vmul.f32 -0.5, %v648
      %v683 = vadd.f32 %v682, 1.0
      %v684 = vmul.f32 %v683, %v648
      %v685 = vand.u32 2147483647, %v648
      %vm686 = vcmp.lt.f32.partialorder %v685, 0.0004427343
      %v687 = vsel %vm686, %v684, %v681
      %v688 = vadd.f32 %v650, 1.0
      %v689 = vlog2.pop %v688
      %v690 = vmul.f32 %v689, 0.6931472
      %v691 = vmul.f32 -0.5, %v650
      %v692 = vadd.f32 %v691, 1.0
      %v693 = vmul.f32 %v692, %v650
      %v694 = vand.u32 2147483647, %v650
      %vm695 = vcmp.lt.f32.partialorder %v694, 0.0004427343
      %v696 = vsel %vm695, %v693, %v690
      %v697 = vadd.f32 %v652, 1.0
      %v698 = vlog2.pop %v697
      %v699 = vmul.f32 %v698, 0.6931472
      %v700 = vmul.f32 -0.5, %v652
      %v701 = vadd.f32 %v700, 1.0
      %v702 = vmul.f32 %v701, %v652
      %v703 = vand.u32 2147483647, %v652
      %vm704 = vcmp.lt.f32.partialorder %v703, 0.0004427343
      %v705 = vsel %vm704, %v702, %v699
      %v706 = vadd.f32 %v654, 1.0
      %v707 = vlog2.pop %v706
      %v708 = vmul.f32 %v707, 0.6931472
      %v709 = vmul.f32 -0.5, %v654
      %v710 = vadd.f32 %v709, 1.0
      %v711 = vmul.f32 %v710, %v654
      %v712 = vand.u32 2147483647, %v654
      %vm713 = vcmp.lt.f32.partialorder %v712, 0.0004427343
      %v714 = vsel %vm713, %v711, %v708
      %v715 = vadd.f32 %v656, 1.0
      %v716 = vlog2.pop %v715
      %v717 = vmul.f32 %v716, 0.6931472
      %v718 = vmul.f32 -0.5, %v656
      %v719 = vadd.f32 %v718, 1.0
      %v720 = vmul.f32 %v719, %v656
      %v721 = vand.u32 2147483647, %v656
      %vm722 = vcmp.lt.f32.partialorder %v721, 0.0004427343
      %v723 = vsel %vm722, %v720, %v717
      %v724 = vadd.f32 %v658, 1.0
      %v725 = vlog2.pop %v724
      %v726 = vmul.f32 %v725, 0.6931472
      %v727 = vmul.f32 -0.5, %v658
      %v728 = vadd.f32 %v727, 1.0
      %v729 = vmul.f32 %v728, %v658
      %v730 = vand.u32 2147483647, %v658
      %vm731 = vcmp.lt.f32.partialorder %v730, 0.0004427343
      %v732 = vsel %vm731, %v729, %v726
      %v733 = vadd.f32 %v660, 1.0
      %v734 = vlog2.pop %v733
      %v735 = vmul.f32 %v734, 0.6931472
      %v736 = vmul.f32 -0.5, %v660
      %v737 = vadd.f32 %v736, 1.0
      %v738 = vmul.f32 %v737, %v660
      %v739 = vand.u32 2147483647, %v660
      %vm740 = vcmp.lt.f32.partialorder %v739, 0.0004427343
      %v741 = vsel %vm740, %v738, %v735
      %v742 = vadd.f32 %v662, 1.0
      %v743 = vlog2.pop %v742
      %v744 = vmul.f32 %v743, 0.6931472
      %v745 = vmul.f32 -0.5, %v662
      %v746 = vadd.f32 %v745, 1.0
      %v747 = vmul.f32 %v746, %v662
      %v748 = vand.u32 2147483647, %v662
      %vm749 = vcmp.lt.f32.partialorder %v748, 0.0004427343
      %v750 = vsel %vm749, %v747, %v744
      %v751 = vadd.f32 %v664, 1.0
      %v752 = vlog2.pop %v751
      %v753 = vmul.f32 %v752, 0.6931472
      %v754 = vmul.f32 -0.5, %v664
      %v755 = vadd.f32 %v754, 1.0
      %v756 = vmul.f32 %v755, %v664
      %v757 = vand.u32 2147483647, %v664
      %vm758 = vcmp.lt.f32.partialorder %v757, 0.0004427343
      %v759 = vsel %vm758, %v756, %v753
      %v760 = vadd.f32 %v666, 1.0
      %v761 = vlog2.pop %v760
      %v762 = vmul.f32 %v761, 0.6931472
      %v763 = vmul.f32 -0.5, %v666
      %v764 = vadd.f32 %v763, 1.0
      %v765 = vmul.f32 %v764, %v666
      %v766 = vand.u32 2147483647, %v666
      %vm767 = vcmp.lt.f32.partialorder %v766, 0.0004427343
      %v768 = vsel %vm767, %v765, %v762
      %v769 = vadd.f32 %v668, 1.0
      %v770 = vlog2.pop %v769
      %v771 = vmul.f32 %v770, 0.6931472
      %v772 = vmul.f32 -0.5, %v668
      %v773 = vadd.f32 %v772, 1.0
      %v774 = vmul.f32 %v773, %v668
      %v775 = vand.u32 2147483647, %v668
      %vm776 = vcmp.lt.f32.partialorder %v775, 0.0004427343
      %v777 = vsel %vm776, %v774, %v771
      %v778 = vadd.f32 %v670, 1.0
      %v779 = vlog2.pop %v778
      %v780 = vmul.f32 %v779, 0.6931472
      %v781 = vmul.f32 -0.5, %v670
      %v782 = vadd.f32 %v781, 1.0
      %v783 = vmul.f32 %v782, %v670
      %v784 = vand.u32 2147483647, %v670
      %vm785 = vcmp.lt.f32.partialorder %v784, 0.0004427343
      %v786 = vsel %vm785, %v783, %v780
      %v787 = vadd.f32 %v672, 1.0
      %v788 = vlog2.pop %v787
      %v789 = vmul.f32 %v788, 0.6931472
      %v790 = vmul.f32 -0.5, %v672
      %v791 = vadd.f32 %v790, 1.0
      %v792 = vmul.f32 %v791, %v672
      %v793 = vand.u32 2147483647, %v672
      %vm794 = vcmp.lt.f32.partialorder %v793, 0.0004427343
      %v795 = vsel %vm794, %v792, %v789
      %v796 = vadd.f32 %v674, 1.0
      %v797 = vlog2.pop %v796
      %v798 = vmul.f32 %v797, 0.6931472
      %v799 = vmul.f32 -0.5, %v674
      %v800 = vadd.f32 %v799, 1.0
      %v801 = vmul.f32 %v800, %v674
      %v802 = vand.u32 2147483647, %v674
      %vm803 = vcmp.lt.f32.partialorder %v802, 0.0004427343
      %v804 = vsel %vm803, %v801, %v798
      %v805 = vadd.f32 %v676, 1.0
      %v806 = vlog2.pop %v805
      %v807 = vmul.f32 %v806, 0.6931472
      %v808 = vmul.f32 -0.5, %v676
      %v809 = vadd.f32 %v808, 1.0
      %v810 = vmul.f32 %v809, %v676
      %v811 = vand.u32 2147483647, %v676
      %vm812 = vcmp.lt.f32.partialorder %v811, 0.0004427343
      %v813 = vsel %vm812, %v810, %v807
      %v814 = vadd.f32 %v678, 1.0
      %v815 = vlog2.pop %v814
      %v816 = vmul.f32 %v815, 0.6931472
      %v817 = vmul.f32 -0.5, %v678
      %v818 = vadd.f32 %v817, 1.0
      %v819 = vmul.f32 %v818, %v678
      %v820 = vand.u32 2147483647, %v678
      %vm821 = vcmp.lt.f32.partialorder %v820, 0.0004427343
      %v822 = vsel %vm821, %v819, %v816
      %v823 = vadd.f32 %v567, %v687
      %v824 = vadd.f32 %v568, %v696
      %v825 = vadd.f32 %v569, %v705
      %v826 = vadd.f32 %v570, %v714
      %v827 = vadd.f32 %v571, %v723
      %v828 = vadd.f32 %v572, %v732
      %v829 = vadd.f32 %v573, %v741
      %v830 = vadd.f32 %v574, %v750
      %v831 = vadd.f32 %v575, %v759
      %v832 = vadd.f32 %v576, %v768
      %v833 = vadd.f32 %v577, %v777
      %v834 = vadd.f32 %v578, %v786
      %v835 = vadd.f32 %v579, %v795
      %v836 = vadd.f32 %v580, %v804
      %v837 = vadd.f32 %v581, %v813
      %v838 = vadd.f32 %v582, %v822
      %v839 = vsel %vm583, %v599, %v823
      %v840 = vsel %vm584, %v600, %v824
      %v841 = vsel %vm585, %v601, %v825
      %v842 = vsel %vm586, %v602, %v826
      %v843 = vsel %vm587, %v603, %v827
      %v844 = vsel %vm588, %v604, %v828
      %v845 = vsel %vm589, %v605, %v829
      %v846 = vsel %vm590, %v606, %v830
      %v847 = vsel %vm591, %v607, %v831
      %v848 = vsel %vm592, %v608, %v832
      %v849 = vsel %vm593, %v609, %v833
      %v850 = vsel %vm594, %v610, %v834
      %v851 = vsel %vm595, %v611, %v835
      %v852 = vsel %vm596, %v612, %v836
      %v853 = vsel %vm597, %v613, %v837
      %v854 = vsel %vm598, %v614, %v838
      %v855 = vmin.f32 %v839, 34.538776
      %v856 = vmin.f32 %v840, 34.538776
      %v857 = vmin.f32 %v841, 34.538776
      %v858 = vmin.f32 %v842, 34.538776
      %v859 = vmin.f32 %v843, 34.538776
      %v860 = vmin.f32 %v844, 34.538776
      %v861 = vmin.f32 %v845, 34.538776
      %v862 = vmin.f32 %v846, 34.538776
      %v863 = vmin.f32 %v847, 34.538776
      %v864 = vmin.f32 %v848, 34.538776
      %v865 = vmin.f32 %v849, 34.538776
      %v866 = vmin.f32 %v850, 34.538776
      %v867 = vmin.f32 %v851, 34.538776
      %v868 = vmin.f32 %v852, 34.538776
      %v869 = vmin.f32 %v853, 34.538776
      %v870 = vmin.f32 %v854, 34.538776
      %v871 = vsel %vm535, %v855, 0.0
      %v872 = vsel %vm536, %v856, 0.0
      %v873 = vsel %vm537, %v857, 0.0
      %v874 = vsel %vm538, %v858, 0.0
      %v875 = vsel %vm539, %v859, 0.0
      %v876 = vsel %vm540, %v860, 0.0
      %v877 = vsel %vm541, %v861, 0.0
      %v878 = vsel %vm542, %v862, 0.0
      %v879 = vsel %vm543, %v863, 0.0
      %v880 = vsel %vm544, %v864, 0.0
      %v881 = vsel %vm545, %v865, 0.0
      %v882 = vsel %vm546, %v866, 0.0
      %v883 = vsel %vm547, %v867, 0.0
      %v884 = vsel %vm548, %v868, 0.0
      %v885 = vsel %vm549, %v869, 0.0
      %v886 = vsel %vm550, %v870, 0.0
      %v887 = vadd.f32 %v871, %v872
      %v888 = vadd.f32 %v873, %v874
      %v889 = vadd.f32 %v875, %v876
      %v890 = vadd.f32 %v877, %v878
      %v891 = vadd.f32 %v879, %v880
      %v892 = vadd.f32 %v881, %v882
      %v893 = vadd.f32 %v883, %v884
      %v894 = vadd.f32 %v885, %v886
      %v895 = vadd.f32 %v887, %v888
      %v896 = vadd.f32 %v889, %v890
      %v897 = vadd.f32 %v891, %v892
      %v898 = vadd.f32 %v893, %v894
      %v899 = vadd.f32 %v895, %v896
      %v900 = vadd.f32 %v897, %v898
      %v901 = vadd.f32 %v899, %v900
      %v902 = vld [vmem:[#allocation4] sm:$0xff]
      %v903 = vadd.f32 %v902, %v901
      %904 = vst [vmem:[#allocation4] sm:$0xff] %v903
    $region29: #{tpu_custom_call.1} parent=1 // pred_fallthru
      _
    // Predicated region
    $region30: #{tpu_custom_call.1} parent=1 // pred_check
      _
    $region31: #{tpu_custom_call.1} parent=1 // pred_check_branch
      %906 = sbr.rel (0) target = $region33
    $region32: #{tpu_custom_call.1} parent=1 // pred_region
      %s908 = ssub.s32 128, 128
      %909 = vsyncadd [#allocation5], %s908
      %s911 = sshll.u32 [#allocation4], 4
      %s912 = int_to_ptr.vmem [resolvable:$true] %s911
      %914 = dma.vmem_to_hbm [thread:$0]  %s912, 128, %s6, [#allocation5]
    $region33: #{tpu_custom_call.1} parent=1 // pred_fallthru
      _
    // Predicated region
    $region34: #{tpu_custom_call.1} parent=1 // pred_check
      _
    $region35: #{tpu_custom_call.1} parent=1 // pred_check_branch
      %916 = sbr.rel (0) target = $region37
    $region36: #{tpu_custom_call.1} parent=1 // pred_region
      %917 = dma.done [#allocation5], 128
    $region37: #{tpu_custom_call.1} parent=1 // pred_fallthru
      _
    %918 = vsyncpa [#allocation5], 1

</llo_original>
